<compile_context>
chip_gen: v7x
topology: tpu7x:2x2x1
jax: 0.10.0
libtpu: 0.0.40
codegen_flags: <defaults>
</compile_context>

<pallas_src>
import jax
import jax.numpy as jnp
from jax.experimental import pallas as pl
from jax.experimental.pallas import tpu as pltpu

B = 2            # batch
C_IN = 16        # conv in channels
L_IN = 49        # conv input length
C_OUT = 42       # conv out channels
K = 32           # conv kernel size
L_OUT = L_IN - K + 1          # 18
FLAT = C_OUT * L_OUT          # 756
IN_FLAT = C_IN * L_IN         # 784
H1, H2, H3, N_CLS = 102, 68, 36, 10

VMEM_SPEC = pl.BlockSpec(memory_space=pltpu.MemorySpace.VMEM)


# ---------------------------------------------------------------------------
# Single fused kernel.
#   x:   (B, 784)   f32
#   w01: (784, 102) bf16   folded conv(+flatten)+f1 weight
#   b01: (1, 102)   f32    folded conv bias pushed through f1
#   w23: (102, 36)  f32    folded f3*f4 weight
#   w4:  (36, 10)   f32,  b4: (1, 10) f32
# ---------------------------------------------------------------------------
def fused_kernel(x_ref, w01_ref, b01_ref, w23_ref, w4_ref, b4_ref, o_ref):
    # conv + flatten + f1 (all linear) as one bf16 MXU matmul, f32 accumulate.
    h = jnp.dot(x_ref[...].astype(jnp.bfloat16), w01_ref[...],
                preferred_element_type=jnp.float32) + b01_ref[...]   # (B, 102)
    h = jnp.tanh(h)                                                   # f2
    # f3 @ f4 folded into one small f32 matmul.
    h = jnp.dot(h, w23_ref[...], preferred_element_type=jnp.float32)  # (B, 36)
    h = jnp.tanh(h)                                                   # f5
    logits = (jnp.dot(h, w4_ref[...], preferred_element_type=jnp.float32)
              + b4_ref[...])                                          # (B, 10)
    # f7: LogSoftmax(dim=1), numerically stable, all f32.
    m = jnp.max(logits, axis=-1, keepdims=True)
    y = logits - m
    lse = jnp.log(jnp.sum(jnp.exp(y), axis=-1, keepdims=True))
    o_ref[...] = y - lse


# ---------------------------------------------------------------------------
# Parameter handling
# ---------------------------------------------------------------------------
def init_params(key):
    """PyTorch-style uniform(-1/sqrt(fan_in), 1/sqrt(fan_in)) init (f32)."""
    ks = jax.random.split(key, 7)

    def u(k, shape, fan_in):
        bound = fan_in ** -0.5
        return jax.random.uniform(k, shape, jnp.float32, -bound, bound)

    return dict(
        w0=u(ks[0], (C_OUT, C_IN, K), C_IN * K),   # Conv1d weight
        b0=u(ks[1], (C_OUT,), C_IN * K),           # Conv1d bias
        w1=u(ks[2], (H1, FLAT), FLAT),             # f1 (no bias)
        w2=u(ks[3], (H2, H1), H1),                 # f3 (no bias)
        w3=u(ks[4], (H3, H2), H2),                 # f4 (no bias)
        w4=u(ks[5], (N_CLS, H3), H3),              # f6
        b4=u(ks[6], (N_CLS,), H3),                 # f6 bias
    )


def prepare_params(params):
    """One-time, outside the hot path: fold linear layers into kernel-ready
    weight layouts (all folds are exact linear-algebra identities)."""
    w0, b0, w1 = params["w0"], params["b0"], params["w1"]

    # Toeplitz-expanded conv weight: WB[c*49+p, l*42+o] = w0[o, c, p-l].
    p_idx = jnp.arange(L_IN)
    l_idx = jnp.arange(L_OUT)
    k = p_idx[:, None] - l_idx[None, :]              # (49, 18)
    valid = (k >= 0) & (k < K)
    kc = jnp.clip(k, 0, K - 1)
    w0_cko = jnp.transpose(w0, (1, 2, 0))            # (16, 32, 42) = [c, k, o]
    gath = w0_cko[:, kc, :]                          # (16, 49, 18, 42)
    wb = jnp.where(valid[None, :, :, None], gath, 0.0)
    wb = wb.reshape(IN_FLAT, FLAT)                   # (784, 756), (l, o) cols

    # Conv bias tiled to the (l, o) flatten order: b0e[l*42+o] = b0[o].
    b0e = jnp.tile(b0, (L_OUT,)).reshape(1, FLAT)    # (1, 756) f32

    # f1 weight permuted to (l, o) row order, transposed for x @ W:
    #   w1p[l*42+o, j] = w1[j, o*18+l]  (matches PyTorch's (o, l) flatten).
    w1p = (w1.reshape(H1, C_OUT, L_OUT)
             .transpose(2, 1, 0)
             .reshape(FLAT, H1))                     # (756, 102) f32

    # Fold conv(+flatten) with f1:  x@WB@W1p + b0e@W1p  (f1 has no bias).
    w01 = (wb @ w1p).astype(jnp.bfloat16)            # (784, 102) bf16
    b01 = b0e @ w1p                                  # (1, 102)   f32

    # Fold f3 and f4 (consecutive bias-free linears, no activation between).
    w23 = params["w2"].T @ params["w3"].T            # (102, 36) f32

    return dict(
        w01=w01, b01=b01, w23=w23,
        w4t=params["w4"].T,                          # (36, 10) f32
        b4=params["b4"].reshape(1, N_CLS),           # (1, 10)  f32
    )


def _cost_estimate(batch):
    flops = 2 * batch * (IN_FLAT * H1 + H1 * H3 + H3 * N_CLS)
    transcendentals = batch * (H1 + H3 + N_CLS + 1)            # tanh, exp, log
    bytes_accessed = (batch * IN_FLAT * 4 + IN_FLAT * H1 * 2 + H1 * 4
                      + H1 * H3 * 4 + H3 * N_CLS * 4 + N_CLS * 4
                      + batch * N_CLS * 4)
    return pl.CostEstimate(flops=flops, transcendentals=transcendentals,
                           bytes_accessed=bytes_accessed)


# ---------------------------------------------------------------------------
# Forward pass: one Pallas call, everything resident in VMEM (no grid).
# ---------------------------------------------------------------------------
def conv1d_then_linear_70(x, prep):
    """x: (B, 16, 49) f32 (or anything with 784 elems/sample) -> (B, 10)."""
    b = x.shape[0]
    x_flat = x.reshape(b, IN_FLAT).astype(jnp.float32)   # free reshape

    return pl.pallas_call(
        fused_kernel,
        out_shape=jax.ShapeDtypeStruct((b, N_CLS), jnp.float32),
        in_specs=[VMEM_SPEC] * 6,
        out_specs=VMEM_SPEC,
        cost_estimate=_cost_estimate(b),
    )(x_flat, prep["w01"], prep["b01"], prep["w23"], prep["w4t"], prep["b4"])


# ---------------------------------------------------------------------------
# Pure-JAX f32 reference (matches the PyTorch module) for a sanity check.
# ---------------------------------------------------------------------------
def reference_forward(x, params):
    xr = x.reshape(-1, C_IN, L_IN)
    patches = jnp.stack([xr[:, :, l:l + K] for l in range(L_OUT)], axis=1)
    y = jnp.einsum('blck,ock->bol', patches, params["w0"]) \
        + params["b0"][None, :, None]                       # (B, 42, 18)
    flat = y.reshape(-1, FLAT)                               # (o, l) order
    h = jnp.tanh(flat @ params["w1"].T)
    h = h @ params["w2"].T
    h = jnp.tanh(h @ params["w3"].T)
    logits = h @ params["w4"].T + params["b4"]
    return jax.nn.log_softmax(logits, axis=-1)


if __name__ == "__main__":
    key = jax.random.PRNGKey(0)
    k_in, k_par = jax.random.split(key)

    x = jax.random.normal(k_in, (B, C_IN, L_IN), dtype=jnp.float32)
    params = init_params(k_par)
    prep = prepare_params(params)            # one-time weight prep (hoisted)

    fwd = jax.jit(conv1d_then_linear_70)
    out = jax.block_until_ready(fwd(x, prep))

    assert out.shape == (B, N_CLS), out.shape
    # log_softmax sanity: rows of exp(out) sum to 1.
    row_sums = jnp.exp(out).sum(axis=1)
    assert jnp.allclose(row_sums, 1.0, atol=1e-4), row_sums

    # Numerical check vs. the f32 reference (bf16 weight storage => loose tol).
    ref = reference_forward(x, params)
    max_err = float(jnp.max(jnp.abs(out - ref)))
    assert max_err < 0.1, max_err

    print("KERNEL_OK")
</pallas_src>

<mosaic_0001>
module attributes {stable_mosaic.version = 11 : i64} {
  func.func @fused_kernel(%arg0: memref<2x784xf32, #tpu.memory_space<vmem>>, %arg1: memref<784x102xbf16, #tpu.memory_space<vmem>>, %arg2: memref<1x102xf32, #tpu.memory_space<vmem>>, %arg3: memref<102x36xf32, #tpu.memory_space<vmem>>, %arg4: memref<36x10xf32, #tpu.memory_space<vmem>>, %arg5: memref<1x10xf32, #tpu.memory_space<vmem>>, %arg6: memref<2x10xf32, #tpu.memory_space<vmem>>) attributes {dimension_semantics = [], scalar_prefetch = 0 : i64, scratch_operands = 0 : i64, tpu.core_type = #tpu.core_type<tc>} {
    %c0 = arith.constant 0 : index
    %c0_0 = arith.constant 0 : index
    %0 = vector.load %arg0[%c0, %c0_0] : memref<2x784xf32, #tpu.memory_space<vmem>>, vector<2x784xf32>
    %1 = arith.truncf %0 : vector<2x784xf32> to vector<2x784xbf16>
    %c0_1 = arith.constant 0 : index
    %c0_2 = arith.constant 0 : index
    %2 = vector.load %arg1[%c0_1, %c0_2] : memref<784x102xbf16, #tpu.memory_space<vmem>>, vector<784x102xbf16>
    %cst = arith.constant dense<0.000000e+00> : vector<2x102xf32>
    %3 = tpu.matmul %1, %2, %cst {dimension_numbers = #tpu.dot_dimension_numbers<[1], [0], [0], [1], [0, 0, 1, 1], [], []>} : vector<2x784xbf16>, vector<784x102xbf16>, vector<2x102xf32> -> vector<2x102xf32>
    %c0_3 = arith.constant 0 : index
    %c0_4 = arith.constant 0 : index
    %4 = vector.load %arg2[%c0_3, %c0_4] : memref<1x102xf32, #tpu.memory_space<vmem>>, vector<1x102xf32>
    %5 = vector.broadcast %4 : vector<1x102xf32> to vector<2x102xf32>
    %6 = arith.addf %3, %5 : vector<2x102xf32>
    %7 = math.tanh %6 : vector<2x102xf32>
    %c0_5 = arith.constant 0 : index
    %c0_6 = arith.constant 0 : index
    %8 = vector.load %arg3[%c0_5, %c0_6] : memref<102x36xf32, #tpu.memory_space<vmem>>, vector<102x36xf32>
    %cst_7 = arith.constant dense<0.000000e+00> : vector<2x36xf32>
    %9 = tpu.matmul %7, %8, %cst_7 {dimension_numbers = #tpu.dot_dimension_numbers<[1], [0], [0], [1], [0, 0, 1, 1], [], []>} : vector<2x102xf32>, vector<102x36xf32>, vector<2x36xf32> -> vector<2x36xf32>
    %10 = math.tanh %9 : vector<2x36xf32>
    %c0_8 = arith.constant 0 : index
    %c0_9 = arith.constant 0 : index
    %11 = vector.load %arg4[%c0_8, %c0_9] : memref<36x10xf32, #tpu.memory_space<vmem>>, vector<36x10xf32>
    %cst_10 = arith.constant dense<0.000000e+00> : vector<2x10xf32>
    %12 = tpu.matmul %10, %11, %cst_10 {dimension_numbers = #tpu.dot_dimension_numbers<[1], [0], [0], [1], [0, 0, 1, 1], [], []>} : vector<2x36xf32>, vector<36x10xf32>, vector<2x10xf32> -> vector<2x10xf32>
    %c0_11 = arith.constant 0 : index
    %c0_12 = arith.constant 0 : index
    %13 = vector.load %arg5[%c0_11, %c0_12] : memref<1x10xf32, #tpu.memory_space<vmem>>, vector<1x10xf32>
    %14 = vector.broadcast %13 : vector<1x10xf32> to vector<2x10xf32>
    %15 = arith.addf %12, %14 : vector<2x10xf32>
    %cst_13 = arith.constant dense<0xFF800000> : vector<2xf32>
    %16 = vector.multi_reduction <maximumf>, %15, %cst_13 [1] : vector<2x10xf32> to vector<2xf32>
    %17 = vector.shape_cast %16 : vector<2xf32> to vector<2x1xf32>
    %18 = vector.broadcast %17 : vector<2x1xf32> to vector<2x10xf32>
    %19 = arith.subf %15, %18 : vector<2x10xf32>
    %20 = math.exp %19 : vector<2x10xf32>
    %cst_14 = arith.constant dense<0.000000e+00> : vector<2xf32>
    %21 = vector.multi_reduction <add>, %20, %cst_14 [1] : vector<2x10xf32> to vector<2xf32>
    %22 = vector.shape_cast %21 : vector<2xf32> to vector<2x1xf32>
    %23 = math.log %22 : vector<2x1xf32>
    %24 = vector.broadcast %23 : vector<2x1xf32> to vector<2x10xf32>
    %25 = arith.subf %19, %24 : vector<2x10xf32>
    %c0_15 = arith.constant 0 : index
    %c0_16 = arith.constant 0 : index
    %26 = vector.load %arg6[%c0_15, %c0_16] : memref<2x10xf32, #tpu.memory_space<vmem>>, vector<2x10xf32>
    tpu.vector_store %arg6[%c0_15, %c0_16], %25 {strides = array<i32>} : memref<2x10xf32, #tpu.memory_space<vmem>>, vector<2x10xf32>,
    return
  }
}

</mosaic_0001>

<llo_original>
// kernel: conv1d_then_linear_70.1
$region0: #{conv1d_then_linear_70.1}
  #allocation0 [shape = 'u32[]', space=smem, size = 0x4, offset = 0x4, fixed_abs, tag = 'smem constant byte address 0x4 - core index']
  #allocation1 [shape = 'u32[144,128]{1,0:T(1,128)}', space=vmem, size = 0x12000, scoped, tag = 'internal scratch']
  %s0 = inlined_call_operand.vmem [shape: f32[2,784], index: 0, kind: input, shape index: {}]
  %s1 = inlined_call_operand.vmem [shape: bf16[784,102], index: 1, kind: input, shape index: {}]
  %s2 = inlined_call_operand.vmem [shape: f32[1,102], index: 2, kind: input, shape index: {}]
  %s3 = inlined_call_operand.vmem [shape: f32[102,36], index: 3, kind: input, shape index: {}]
  %s4 = inlined_call_operand.vmem [shape: f32[36,10], index: 4, kind: input, shape index: {}]
  %s5 = inlined_call_operand.vmem [shape: f32[1,10], index: 5, kind: input, shape index: {}]
  %s6 = inlined_call_operand.hbm [shape: f32[2,10], index: 6, kind: output, shape index: {}]
  %s7 = sld [smem:[#allocation0]]
  $region34: #{conv1d_then_linear_70.1} parent=0
    _
  %s9 = ssub.s32 1, %s7
  %s10 = scalar_select 0, %s9, %s7
  $region1: #{conv1d_then_linear_70.1} parent=0
    #allocation2 [shape = 'u8[1024]{0}', space=vmem, size = 0x400, scoped, tag = 'output window, operand 0, single buffered']
    #allocation3 [shape = 's32[1]{0}', space=sflag, size = 0x4, scoped, tag = 'scoped memory for conv1d_then_linear_70.1']
    %11 = vsyncpa [#allocation3], 0
    // Predicated region
    $region2: #{conv1d_then_linear_70.1} parent=1 // pred_check
      _
    $region3: #{conv1d_then_linear_70.1} parent=1 // pred_check_branch
      %13 = sbr.rel (0) target = $region5
    $region4: #{conv1d_then_linear_70.1} parent=1 // pred_region
      _
    $region5: #{conv1d_then_linear_70.1} parent=1 // pred_fallthru
      _
    // Predicated region
    $region6: #{conv1d_then_linear_70.1} parent=1 // pred_check
      _
    $region7: #{conv1d_then_linear_70.1} parent=1 // pred_check_branch
      %15 = sbr.rel (0) target = $region9
    $region8: #{conv1d_then_linear_70.1} parent=1 // pred_region
      _
    $region9: #{conv1d_then_linear_70.1} parent=1 // pred_fallthru
      _
    // Predicated region
    $region10: #{conv1d_then_linear_70.1} parent=1 // pred_check
      _
    $region11: #{conv1d_then_linear_70.1} parent=1 // pred_check_branch
      %17 = sbr.rel (0) target = $region13
    $region12: #{conv1d_then_linear_70.1} parent=1 // pred_region
      _
    $region13: #{conv1d_then_linear_70.1} parent=1 // pred_fallthru
      _
    // Predicated region
    $region14: #{conv1d_then_linear_70.1} parent=1 // pred_check
      _
    $region15: #{conv1d_then_linear_70.1} parent=1 // pred_check_branch
      %19 = sbr.rel (0) target = $region17
    $region16: #{conv1d_then_linear_70.1} parent=1 // pred_region
      _
    $region17: #{conv1d_then_linear_70.1} parent=1 // pred_fallthru
      _
    // Predicated region
    $region18: #{conv1d_then_linear_70.1} parent=1 // pred_check
      _
    $region19: #{conv1d_then_linear_70.1} parent=1 // pred_check_branch
      %21 = sbr.rel (0) target = $region21
    $region20: #{conv1d_then_linear_70.1} parent=1 // pred_region
      _
    $region21: #{conv1d_then_linear_70.1} parent=1 // pred_fallthru
      _
    // Predicated region
    $region22: #{conv1d_then_linear_70.1} parent=1 // pred_check
      _
    $region23: #{conv1d_then_linear_70.1} parent=1 // pred_check_branch
      %23 = sbr.rel (0) target = $region25
    $region24: #{conv1d_then_linear_70.1} parent=1 // pred_region
      _
    $region25: #{conv1d_then_linear_70.1} parent=1 // pred_fallthru
      _
    %v25 = vld [vmem:[%s0] sm:$0xff]
    %v26 = vld [vmem:[%s0 + $0x8] sm:$0x3f]
    %v29 = vcombine.high %v25, %v25
    %v31 = vunpack.c.l.s4 1983009808
    %v32 = vunpack.c.0.s8 %v31
    %v33 = vlaneseq
    %v34 = vshrl.u32 %v33, 7
    %v35 = vsub.s32 %v32, %v34
    %v36 = vrot.slane %v25, %v35
    %v38 = vunpack.c.l.s4 1983009808
    %v39 = vunpack.c.0.s8 %v38
    %v40 = vlaneseq
    %v41 = vshrl.u32 %v40, 7
    %v42 = vsub.s32 %v39, %v41
    %v43 = vrot.slane %v29, %v42
    %v44 = vcombine.high %v36, %v36
    %v45 = vcombine.high %v43, %v43
    %v46 = vcombine.high %v26, %v26
    %v48 = vunpack.c.l.s4 1983009808
    %v49 = vunpack.c.0.s8 %v48
    %v50 = vlaneseq
    %v51 = vshrl.u32 %v50, 7
    %v52 = vsub.s32 %v49, %v51
    %v53 = vrot.slane %v26, %v52
    %v55 = vunpack.c.l.s4 1983009808
    %v56 = vunpack.c.0.s8 %v55
    %v57 = vlaneseq
    %v58 = vshrl.u32 %v57, 7
    %v59 = vsub.s32 %v56, %v58
    %v60 = vrot.slane %v46, %v59
    %v61 = vcombine.high %v53, %v53
    %v69 = vpack.c.bf16 %v36, %v36
    %v70 = vpack.c.bf16 %v44, %v44
    %v71 = vpack.c.bf16 %v43, %v43
    %v72 = vpack.c.bf16 %v45, %v45
    %v73 = vpack.c.bf16 %v53, %v53
    %v74 = vpack.c.bf16 %v61, %v61
    %v75 = vpack.c.bf16 %v60, %v60
    %v76 = vld [vmem:[%s1] sm:$0xf]
    %v77 = vld [vmem:[%s1 + $0x4] sm:$0xf]
    %v78 = vld [vmem:[%s1 + $0x8] sm:$0xf]
    %v79 = vld [vmem:[%s1 + $0xc] sm:$0xf]
    %v80 = vld [vmem:[%s1 + $0x10] sm:$0xf]
    %v81 = vld [vmem:[%s1 + $0x14] sm:$0xf]
    %v82 = vld [vmem:[%s1 + $0x18] sm:$0xf]
    %v83 = vld [vmem:[%s1 + $0x1c] sm:$0xf]
    %v84 = vld [vmem:[%s1 + $0x20] sm:$0xf]
    %v85 = vld [vmem:[%s1 + $0x24] sm:$0xf]
    %v86 = vld [vmem:[%s1 + $0x28] sm:$0xf]
    %v87 = vld [vmem:[%s1 + $0x2c] sm:$0xf]
    %v88 = vld [vmem:[%s1 + $0x30] sm:$0xf]
    %v89 = vld [vmem:[%s1 + $0x34] sm:$0xf]
    %v90 = vld [vmem:[%s1 + $0x38] sm:$0xf]
    %v91 = vld [vmem:[%s1 + $0x3c] sm:$0xf]
    %v92 = vld [vmem:[%s1 + $0x40] sm:$0xf]
    %v93 = vld [vmem:[%s1 + $0x44] sm:$0xf]
    %v94 = vld [vmem:[%s1 + $0x48] sm:$0xf]
    %v95 = vld [vmem:[%s1 + $0x4c] sm:$0xf]
    %v96 = vld [vmem:[%s1 + $0x50] sm:$0xf]
    %v97 = vld [vmem:[%s1 + $0x54] sm:$0xf]
    %v98 = vld [vmem:[%s1 + $0x58] sm:$0xf]
    %v99 = vld [vmem:[%s1 + $0x5c] sm:$0xf]
    %v100 = vld [vmem:[%s1 + $0x60] sm:$0xf]
    %v101 = vld [vmem:[%s1 + $0x64] sm:$0xf]
    %v102 = vld [vmem:[%s1 + $0x68] sm:$0xf]
    %v103 = vld [vmem:[%s1 + $0x6c] sm:$0xf]
    %v104 = vld [vmem:[%s1 + $0x70] sm:$0xf]
    %v105 = vld [vmem:[%s1 + $0x74] sm:$0xf]
    %v106 = vld [vmem:[%s1 + $0x78] sm:$0xf]
    %v107 = vld [vmem:[%s1 + $0x7c] sm:$0xf]
    %v108 = vld [vmem:[%s1 + $0x80] sm:$0xf]
    %v109 = vld [vmem:[%s1 + $0x84] sm:$0xf]
    %v110 = vld [vmem:[%s1 + $0x88] sm:$0xf]
    %v111 = vld [vmem:[%s1 + $0x8c] sm:$0xf]
    %v112 = vld [vmem:[%s1 + $0x90] sm:$0xf]
    %v113 = vld [vmem:[%s1 + $0x94] sm:$0xf]
    %v114 = vld [vmem:[%s1 + $0x98] sm:$0xf]
    %v115 = vld [vmem:[%s1 + $0x9c] sm:$0xf]
    %v116 = vld [vmem:[%s1 + $0xa0] sm:$0xf]
    %v117 = vld [vmem:[%s1 + $0xa4] sm:$0xf]
    %v118 = vld [vmem:[%s1 + $0xa8] sm:$0xf]
    %v119 = vld [vmem:[%s1 + $0xac] sm:$0xf]
    %v120 = vld [vmem:[%s1 + $0xb0] sm:$0xf]
    %v121 = vld [vmem:[%s1 + $0xb4] sm:$0xf]
    %v122 = vld [vmem:[%s1 + $0xb8] sm:$0xf]
    %v123 = vld [vmem:[%s1 + $0xbc] sm:$0xf]
    %v124 = vld [vmem:[%s1 + $0xc0] sm:$0xf]
    %v125 = vld [vmem:[%s1 + $0xc4] sm:$0xf]
    %v126 = vld [vmem:[%s1 + $0xc8] sm:$0xf]
    %v127 = vld [vmem:[%s1 + $0xcc] sm:$0xf]
    %v128 = vld [vmem:[%s1 + $0xd0] sm:$0xf]
    %v129 = vld [vmem:[%s1 + $0xd4] sm:$0xf]
    %v130 = vld [vmem:[%s1 + $0xd8] sm:$0xf]
    %v131 = vld [vmem:[%s1 + $0xdc] sm:$0xf]
    %v132 = vld [vmem:[%s1 + $0xe0] sm:$0xf]
    %v133 = vld [vmem:[%s1 + $0xe4] sm:$0xf]
    %v134 = vld [vmem:[%s1 + $0xe8] sm:$0xf]
    %v135 = vld [vmem:[%s1 + $0xec] sm:$0xf]
    %v136 = vld [vmem:[%s1 + $0xf0] sm:$0xf]
    %v137 = vld [vmem:[%s1 + $0xf4] sm:$0xf]
    %v138 = vld [vmem:[%s1 + $0xf8] sm:$0xf]
    %v139 = vld [vmem:[%s1 + $0xfc] sm:$0xf]
    %v140 = vld [vmem:[%s1 + $0x100] sm:$0xf]
    %v141 = vld [vmem:[%s1 + $0x104] sm:$0xf]
    %v142 = vld [vmem:[%s1 + $0x108] sm:$0xf]
    %v143 = vld [vmem:[%s1 + $0x10c] sm:$0xf]
    %v144 = vld [vmem:[%s1 + $0x110] sm:$0xf]
    %v145 = vld [vmem:[%s1 + $0x114] sm:$0xf]
    %v146 = vld [vmem:[%s1 + $0x118] sm:$0xf]
    %v147 = vld [vmem:[%s1 + $0x11c] sm:$0xf]
    %v148 = vld [vmem:[%s1 + $0x120] sm:$0xf]
    %v149 = vld [vmem:[%s1 + $0x124] sm:$0xf]
    %v150 = vld [vmem:[%s1 + $0x128] sm:$0xf]
    %v151 = vld [vmem:[%s1 + $0x12c] sm:$0xf]
    %v152 = vld [vmem:[%s1 + $0x130] sm:$0xf]
    %v153 = vld [vmem:[%s1 + $0x134] sm:$0xf]
    %v154 = vld [vmem:[%s1 + $0x138] sm:$0xf]
    %v155 = vld [vmem:[%s1 + $0x13c] sm:$0xf]
    %v156 = vld [vmem:[%s1 + $0x140] sm:$0xf]
    %v157 = vld [vmem:[%s1 + $0x144] sm:$0xf]
    %v158 = vld [vmem:[%s1 + $0x148] sm:$0xf]
    %v159 = vld [vmem:[%s1 + $0x14c] sm:$0xf]
    %v160 = vld [vmem:[%s1 + $0x150] sm:$0xf]
    %v161 = vld [vmem:[%s1 + $0x154] sm:$0xf]
    %v162 = vld [vmem:[%s1 + $0x158] sm:$0xf]
    %v163 = vld [vmem:[%s1 + $0x15c] sm:$0xf]
    %v164 = vld [vmem:[%s1 + $0x160] sm:$0xf]
    %v165 = vld [vmem:[%s1 + $0x164] sm:$0xf]
    %v166 = vld [vmem:[%s1 + $0x168] sm:$0xf]
    %v167 = vld [vmem:[%s1 + $0x16c] sm:$0xf]
    %v168 = vld [vmem:[%s1 + $0x170] sm:$0xf]
    %v169 = vld [vmem:[%s1 + $0x174] sm:$0xf]
    %v170 = vld [vmem:[%s1 + $0x178] sm:$0xf]
    %v171 = vld [vmem:[%s1 + $0x17c] sm:$0xf]
    %v172 = vld [vmem:[%s1 + $0x180] sm:$0xf]
    %v173 = vld [vmem:[%s1 + $0x184] sm:$0xf]
    %v174 = vld [vmem:[%s2] sm:$0x1]
    %v176 = vlaneseq
    %v177 = vshrl.u32 %v176, 7
    %v178 = vsub.s32 0, %v177
    %v179 = vrot.slane %v174, %v178
    %v279 = vunpack.c.l.b16 %v76
    %v280 = vunpack.c.l.b16 %v77
    %v281 = vunpack.c.l.b16 %v78
    %v282 = vunpack.c.l.b16 %v79
    %v283 = vunpack.c.l.b16 %v80
    %v284 = vunpack.c.l.b16 %v81
    %v285 = vunpack.c.l.b16 %v82
    %v286 = vunpack.c.l.b16 %v83
    %v287 = vunpack.c.l.b16 %v84
    %v288 = vunpack.c.l.b16 %v85
    %v289 = vunpack.c.l.b16 %v86
    %v290 = vunpack.c.l.b16 %v87
    %v291 = vunpack.c.l.b16 %v88
    %v292 = vunpack.c.l.b16 %v89
    %v293 = vunpack.c.l.b16 %v90
    %v294 = vunpack.c.l.b16 %v91
    %v295 = vunpack.c.l.b16 %v92
    %v296 = vunpack.c.l.b16 %v93
    %v297 = vunpack.c.l.b16 %v94
    %v298 = vunpack.c.l.b16 %v95
    %v299 = vunpack.c.l.b16 %v96
    %v300 = vunpack.c.l.b16 %v97
    %v301 = vunpack.c.l.b16 %v98
    %v302 = vunpack.c.l.b16 %v99
    %v303 = vunpack.c.l.b16 %v100
    %v304 = vunpack.c.l.b16 %v101
    %v305 = vunpack.c.l.b16 %v102
    %v306 = vunpack.c.l.b16 %v103
    %v307 = vunpack.c.l.b16 %v104
    %v308 = vunpack.c.l.b16 %v105
    %v309 = vunpack.c.l.b16 %v106
    %v310 = vunpack.c.l.b16 %v107
    %v311 = vunpack.c.l.b16 %v108
    %v312 = vunpack.c.l.b16 %v109
    %v313 = vunpack.c.l.b16 %v110
    %v314 = vunpack.c.l.b16 %v111
    %v315 = vunpack.c.l.b16 %v112
    %v316 = vunpack.c.l.b16 %v113
    %v317 = vunpack.c.l.b16 %v114
    %v318 = vunpack.c.l.b16 %v115
    %v319 = vunpack.c.l.b16 %v116
    %v320 = vunpack.c.l.b16 %v117
    %v321 = vunpack.c.l.b16 %v118
    %v322 = vunpack.c.l.b16 %v119
    %v323 = vunpack.c.l.b16 %v120
    %v324 = vunpack.c.l.b16 %v121
    %v325 = vunpack.c.l.b16 %v122
    %v326 = vunpack.c.l.b16 %v123
    %v327 = vunpack.c.l.b16 %v124
    %v328 = vunpack.c.l.b16 %v125
    %v329 = vunpack.c.l.b16 %v126
    %v330 = vunpack.c.l.b16 %v127
    %v331 = vunpack.c.l.b16 %v128
    %v332 = vunpack.c.l.b16 %v129
    %v333 = vunpack.c.l.b16 %v130
    %v334 = vunpack.c.l.b16 %v131
    %v335 = vunpack.c.l.b16 %v132
    %v336 = vunpack.c.l.b16 %v133
    %v337 = vunpack.c.l.b16 %v134
    %v338 = vunpack.c.l.b16 %v135
    %v339 = vunpack.c.l.b16 %v136
    %v340 = vunpack.c.l.b16 %v137
    %v341 = vunpack.c.l.b16 %v138
    %v342 = vunpack.c.l.b16 %v139
    %v343 = vunpack.c.l.b16 %v140
    %v344 = vunpack.c.l.b16 %v141
    %v345 = vunpack.c.l.b16 %v142
    %v346 = vunpack.c.l.b16 %v143
    %v347 = vunpack.c.l.b16 %v144
    %v348 = vunpack.c.l.b16 %v145
    %v349 = vunpack.c.l.b16 %v146
    %v350 = vunpack.c.l.b16 %v147
    %v351 = vunpack.c.l.b16 %v148
    %v352 = vunpack.c.l.b16 %v149
    %v353 = vunpack.c.l.b16 %v150
    %v354 = vunpack.c.l.b16 %v151
    %v355 = vunpack.c.l.b16 %v152
    %v356 = vunpack.c.l.b16 %v153
    %v357 = vunpack.c.l.b16 %v154
    %v358 = vunpack.c.l.b16 %v155
    %v359 = vunpack.c.l.b16 %v156
    %v360 = vunpack.c.l.b16 %v157
    %v361 = vunpack.c.l.b16 %v158
    %v362 = vunpack.c.l.b16 %v159
    %v363 = vunpack.c.l.b16 %v160
    %v364 = vunpack.c.l.b16 %v161
    %v365 = vunpack.c.l.b16 %v162
    %v366 = vunpack.c.l.b16 %v163
    %v367 = vunpack.c.l.b16 %v164
    %v368 = vunpack.c.l.b16 %v165
    %v369 = vunpack.c.l.b16 %v166
    %v370 = vunpack.c.l.b16 %v167
    %v371 = vunpack.c.l.b16 %v168
    %v372 = vunpack.c.l.b16 %v169
    %v373 = vunpack.c.l.b16 %v170
    %v374 = vunpack.c.l.b16 %v171
    %v375 = vunpack.c.l.b16 %v172
    %v376 = vunpack.c.l.b16 %v173
    %v377 = vpack.c.b16 %v280, %v279
    %v378 = vpack.c.b16 %v282, %v281
    %v379 = vpack.c.b16 %v284, %v283
    %v380 = vpack.c.b16 %v286, %v285
    %v381 = vpack.c.b16 %v288, %v287
    %v382 = vpack.c.b16 %v290, %v289
    %v383 = vpack.c.b16 %v292, %v291
    %v384 = vpack.c.b16 %v294, %v293
    %v385 = vpack.c.b16 %v296, %v295
    %v386 = vpack.c.b16 %v298, %v297
    %v387 = vpack.c.b16 %v300, %v299
    %v388 = vpack.c.b16 %v302, %v301
    %v389 = vpack.c.b16 %v304, %v303
    %v390 = vpack.c.b16 %v306, %v305
    %v391 = vpack.c.b16 %v308, %v307
    %v392 = vpack.c.b16 %v310, %v309
    %v393 = vpack.c.b16 %v312, %v311
    %v394 = vpack.c.b16 %v314, %v313
    %v395 = vpack.c.b16 %v316, %v315
    %v396 = vpack.c.b16 %v318, %v317
    %v397 = vpack.c.b16 %v320, %v319
    %v398 = vpack.c.b16 %v322, %v321
    %v399 = vpack.c.b16 %v324, %v323
    %v400 = vpack.c.b16 %v326, %v325
    %v401 = vpack.c.b16 %v328, %v327
    %v402 = vpack.c.b16 %v330, %v329
    %v403 = vpack.c.b16 %v332, %v331
    %v404 = vpack.c.b16 %v334, %v333
    %v405 = vpack.c.b16 %v336, %v335
    %v406 = vpack.c.b16 %v338, %v337
    %v407 = vpack.c.b16 %v340, %v339
    %v408 = vpack.c.b16 %v342, %v341
    %v409 = vpack.c.b16 %v344, %v343
    %v410 = vpack.c.b16 %v346, %v345
    %v411 = vpack.c.b16 %v348, %v347
    %v412 = vpack.c.b16 %v350, %v349
    %v413 = vpack.c.b16 %v352, %v351
    %v414 = vpack.c.b16 %v354, %v353
    %v415 = vpack.c.b16 %v356, %v355
    %v416 = vpack.c.b16 %v358, %v357
    %v417 = vpack.c.b16 %v360, %v359
    %v418 = vpack.c.b16 %v362, %v361
    %v419 = vpack.c.b16 %v364, %v363
    %v420 = vpack.c.b16 %v366, %v365
    %v421 = vpack.c.b16 %v368, %v367
    %v422 = vpack.c.b16 %v370, %v369
    %v423 = vpack.c.b16 %v372, %v371
    %v424 = vpack.c.b16 %v374, %v373
    %v425 = vpack.c.b16 %v376, %v375
    %vm475 = vcmask 130048
    %v477 = vsel %vm475, %v75, 0
    %479 = vmatprep.subr.bf16.mxu0 0
    %480 = vmatpush1.bf16.msra.mxu0 %v377
    %481 = vmatprep.subr.bf16.mxu0 0
    %482 = vmatpush1.bf16.msra.mxu0 %v378
    %483 = vmatprep.subr.bf16.mxu0 0
    %484 = vmatpush1.bf16.msra.mxu0 %v379
    %485 = vmatprep.subr.bf16.mxu0 0
    %486 = vmatpush1.bf16.msra.mxu0 %v380
    %487 = vmatprep.subr.bf16.mxu0 0
    %488 = vmatpush1.bf16.msra.mxu0 %v381
    %489 = vmatprep.subr.bf16.mxu0 0
    %490 = vmatpush1.bf16.msra.mxu0 %v382
    %491 = vmatprep.subr.bf16.mxu0 0
    %492 = vmatpush1.bf16.msra.mxu0 %v383
    %493 = vmatprep.subr.bf16.mxu0 0
    %494 = vmatpush1.bf16.msra.mxu0 %v384
    %495 = vmatprep.subr.bf16.mxu0 0
    %496 = vmatpush1.bf16.msra.mxu0 %v385
    %497 = vmatprep.subr.bf16.mxu0 0
    %498 = vmatpush1.bf16.msra.mxu0 %v386
    %499 = vmatprep.subr.bf16.mxu0 0
    %500 = vmatpush1.bf16.msra.mxu0 %v387
    %501 = vmatprep.subr.bf16.mxu0 0
    %502 = vmatpush1.bf16.msra.mxu0 %v388
    %503 = vmatprep.subr.bf16.mxu0 0
    %504 = vmatpush1.bf16.msra.mxu0 %v389
    %505 = vmatprep.subr.bf16.mxu0 0
    %506 = vmatpush1.bf16.msra.mxu0 %v390
    %507 = vmatprep.subr.bf16.mxu0 0
    %508 = vmatpush1.bf16.msra.mxu0 %v391
    %509 = vmatprep.subr.bf16.mxu0 0
    %510 = vmatpush1.bf16.msra.mxu0 %v392
    %511 = vmatprep.mubr.bf16.mxu0 %v70
    %512 = vmatmul.mubr.bf16.gmra.mrb[0].mxu0 %v69
    %v513 = vpop.f32.mrb[0].mxu0
    %v514 = vadd.f32 %v179, %v513
    %v515 = vpop.f32.mrb[0].mxu0
    %v516 = vpop.f32.mrb[0].mxu0
    %v517 = vpop.f32.mrb[0].mxu0
    %518 = vdwg.mxu0
    %519 = vmatprep.subr.bf16.mxu0 0
    %520 = vmatpush1.bf16.msra.mxu0 %v393
    %521 = vmatprep.subr.bf16.mxu0 0
    %522 = vmatpush1.bf16.msra.mxu0 %v394
    %523 = vmatprep.subr.bf16.mxu0 0
    %524 = vmatpush1.bf16.msra.mxu0 %v395
    %525 = vmatprep.subr.bf16.mxu0 0
    %526 = vmatpush1.bf16.msra.mxu0 %v396
    %527 = vmatprep.subr.bf16.mxu0 0
    %528 = vmatpush1.bf16.msra.mxu0 %v397
    %529 = vmatprep.subr.bf16.mxu0 0
    %530 = vmatpush1.bf16.msra.mxu0 %v398
    %531 = vmatprep.subr.bf16.mxu0 0
    %532 = vmatpush1.bf16.msra.mxu0 %v399
    %533 = vmatprep.subr.bf16.mxu0 0
    %534 = vmatpush1.bf16.msra.mxu0 %v400
    %535 = vmatprep.subr.bf16.mxu0 0
    %536 = vmatpush1.bf16.msra.mxu0 %v401
    %537 = vmatprep.subr.bf16.mxu0 0
    %538 = vmatpush1.bf16.msra.mxu0 %v402
    %539 = vmatprep.subr.bf16.mxu0 0
    %540 = vmatpush1.bf16.msra.mxu0 %v403
    %541 = vmatprep.subr.bf16.mxu0 0
    %542 = vmatpush1.bf16.msra.mxu0 %v404
    %543 = vmatprep.subr.bf16.mxu0 0
    %544 = vmatpush1.bf16.msra.mxu0 %v405
    %545 = vmatprep.subr.bf16.mxu0 0
    %546 = vmatpush1.bf16.msra.mxu0 %v406
    %547 = vmatprep.subr.bf16.mxu0 0
    %548 = vmatpush1.bf16.msra.mxu0 %v407
    %549 = vmatprep.subr.bf16.mxu0 0
    %550 = vmatpush1.bf16.msra.mxu0 %v408
    %551 = vmatprep.mubr.bf16.mxu0 %v72
    %552 = vmatmul.mubr.bf16.gmra.mrb[0].mxu0 %v71
    %v553 = vpop.f32.mrb[0].mxu0
    %v554 = vadd.f32 %v514, %v553
    %v555 = vpop.f32.mrb[0].mxu0
    %v556 = vpop.f32.mrb[0].mxu0
    %v557 = vpop.f32.mrb[0].mxu0
    %558 = vdwg.mxu0
    %559 = vmatprep.subr.bf16.mxu0 0
    %560 = vmatpush1.bf16.msra.mxu0 %v409
    %561 = vmatprep.subr.bf16.mxu0 0
    %562 = vmatpush1.bf16.msra.mxu0 %v410
    %563 = vmatprep.subr.bf16.mxu0 0
    %564 = vmatpush1.bf16.msra.mxu0 %v411
    %565 = vmatprep.subr.bf16.mxu0 0
    %566 = vmatpush1.bf16.msra.mxu0 %v412
    %567 = vmatprep.subr.bf16.mxu0 0
    %568 = vmatpush1.bf16.msra.mxu0 %v413
    %569 = vmatprep.subr.bf16.mxu0 0
    %570 = vmatpush1.bf16.msra.mxu0 %v414
    %571 = vmatprep.subr.bf16.mxu0 0
    %572 = vmatpush1.bf16.msra.mxu0 %v415
    %573 = vmatprep.subr.bf16.mxu0 0
    %574 = vmatpush1.bf16.msra.mxu0 %v416
    %575 = vmatprep.subr.bf16.mxu0 0
    %576 = vmatpush1.bf16.msra.mxu0 %v417
    %577 = vmatprep.subr.bf16.mxu0 0
    %578 = vmatpush1.bf16.msra.mxu0 %v418
    %579 = vmatprep.subr.bf16.mxu0 0
    %580 = vmatpush1.bf16.msra.mxu0 %v419
    %581 = vmatprep.subr.bf16.mxu0 0
    %582 = vmatpush1.bf16.msra.mxu0 %v420
    %583 = vmatprep.subr.bf16.mxu0 0
    %584 = vmatpush1.bf16.msra.mxu0 %v421
    %585 = vmatprep.subr.bf16.mxu0 0
    %586 = vmatpush1.bf16.msra.mxu0 %v422
    %587 = vmatprep.subr.bf16.mxu0 0
    %588 = vmatpush1.bf16.msra.mxu0 %v423
    %589 = vmatprep.subr.bf16.mxu0 0
    %590 = vmatpush1.bf16.msra.mxu0 %v424
    %591 = vmatprep.mubr.bf16.mxu0 %v74
    %592 = vmatmul.mubr.bf16.gmra.mrb[0].mxu0 %v73
    %v593 = vpop.f32.mrb[0].mxu0
    %v594 = vadd.f32 %v554, %v593
    %v595 = vpop.f32.mrb[0].mxu0
    %v596 = vpop.f32.mrb[0].mxu0
    %v597 = vpop.f32.mrb[0].mxu0
    %598 = vdwg.mxu0
    %599 = vmatprep.subr.bf16.mxu0 0
    %600 = vmatpush1.bf16.msra.mxu0 %v425
    %601 = vmatprep.subr.bf16.mxu0 0
    %602 = vmatpush1.bf16.msra.mxu0 0
    %603 = vmatprep.subr.bf16.mxu0 0
    %604 = vmatpush1.bf16.msra.mxu0 0
    %605 = vmatprep.subr.bf16.mxu0 0
    %606 = vmatpush1.bf16.msra.mxu0 0
    %607 = vmatprep.subr.bf16.mxu0 0
    %608 = vmatpush1.bf16.msra.mxu0 0
    %609 = vmatprep.subr.bf16.mxu0 0
    %610 = vmatpush1.bf16.msra.mxu0 0
    %611 = vmatprep.subr.bf16.mxu0 0
    %612 = vmatpush1.bf16.msra.mxu0 0
    %613 = vmatprep.subr.bf16.mxu0 0
    %614 = vmatpush1.bf16.msra.mxu0 0
    %615 = vmatprep.subr.bf16.mxu0 0
    %616 = vmatpush1.bf16.msra.mxu0 0
    %617 = vmatprep.subr.bf16.mxu0 0
    %618 = vmatpush1.bf16.msra.mxu0 0
    %619 = vmatprep.subr.bf16.mxu0 0
    %620 = vmatpush1.bf16.msra.mxu0 0
    %621 = vmatprep.subr.bf16.mxu0 0
    %622 = vmatpush1.bf16.msra.mxu0 0
    %623 = vmatprep.subr.bf16.mxu0 0
    %624 = vmatpush1.bf16.msra.mxu0 0
    %625 = vmatprep.subr.bf16.mxu0 0
    %626 = vmatpush1.bf16.msra.mxu0 0
    %627 = vmatprep.subr.bf16.mxu0 0
    %628 = vmatpush1.bf16.msra.mxu0 0
    %629 = vmatprep.subr.bf16.mxu0 0
    %630 = vmatpush1.bf16.msra.mxu0 0
    %631 = vmatprep.mubr.bf16.mxu0 0
    %632 = vmatmul.mubr.bf16.gmra.mrb[0].mxu0 %v477
    %v633 = vpop.f32.mrb[0].mxu0
    %v634 = vadd.f32 %v594, %v633
    %v635 = vpop.f32.mrb[0].mxu0
    %v636 = vpop.f32.mrb[0].mxu0
    %v637 = vpop.f32.mrb[0].mxu0
    %638 = vdwg.mxu0
    %v639 = vtanh.pop %v634
    %v640 = vld [vmem:[%s3] sm:$0xff]
    %v641 = vld [vmem:[%s3 + $0x8] sm:$0xff]
    %v642 = vld [vmem:[%s3 + $0x10] sm:$0xff]
    %v643 = vld [vmem:[%s3 + $0x18] sm:$0xff]
    %v644 = vld [vmem:[%s3 + $0x20] sm:$0xff]
    %v645 = vld [vmem:[%s3 + $0x28] sm:$0xff]
    %v646 = vld [vmem:[%s3 + $0x30] sm:$0xff]
    %v647 = vld [vmem:[%s3 + $0x38] sm:$0xff]
    %v648 = vld [vmem:[%s3 + $0x40] sm:$0xff]
    %v649 = vld [vmem:[%s3 + $0x48] sm:$0xff]
    %v650 = vld [vmem:[%s3 + $0x50] sm:$0xff]
    %v651 = vld [vmem:[%s3 + $0x58] sm:$0xff]
    %v652 = vld [vmem:[%s3 + $0x60] sm:$0x3f]
    %vm653 = vcmask 834560
    %v655 = vsel %vm653, %v639, 0
    %vm657 = vcmask 1045504
    %v659 = vsel %vm657, %v652, 0
    %661 = vmatprep.subr.mxu0 0.0
    %662 = vmatpush1.msra.mxu0 %v640
    %663 = vmatprep.subr.mxu0 0.0
    %664 = vmatpush1.msra.mxu0 %v641
    %665 = vmatprep.subr.mxu0 0.0
    %666 = vmatpush1.msra.mxu0 %v642
    %667 = vmatprep.subr.mxu0 0.0
    %668 = vmatpush1.msra.mxu0 %v643
    %669 = vmatprep.subr.mxu0 0.0
    %670 = vmatpush1.msra.mxu0 %v644
    %671 = vmatprep.subr.mxu0 0.0
    %672 = vmatpush1.msra.mxu0 %v645
    %673 = vmatprep.subr.mxu0 0.0
    %674 = vmatpush1.msra.mxu0 %v646
    %675 = vmatprep.subr.mxu0 0.0
    %676 = vmatpush1.msra.mxu0 %v647
    %677 = vmatprep.subr.mxu0 0.0
    %678 = vmatpush1.msra.mxu0 %v648
    %679 = vmatprep.subr.mxu0 0.0
    %680 = vmatpush1.msra.mxu0 %v649
    %681 = vmatprep.subr.mxu0 0.0
    %682 = vmatpush1.msra.mxu0 %v650
    %683 = vmatprep.subr.mxu0 0.0
    %684 = vmatpush1.msra.mxu0 %v651
    %685 = vmatprep.subr.mxu0 0.0
    %686 = vmatpush1.msra.mxu0 %v659
    %687 = vmatprep.subr.mxu0 0.0
    %688 = vmatpush1.msra.mxu0 0.0
    %689 = vmatprep.subr.mxu0 0.0
    %690 = vmatpush1.msra.mxu0 0.0
    %691 = vmatprep.subr.mxu0 0.0
    %692 = vmatpush1.msra.mxu0 0.0
    %693 = vmatprep.subr.mxu0 0.0
    %694 = vmatpush1.msra.mxu0 0.0
    %695 = vmatprep.subr.mxu0 0.0
    %696 = vmatpush1.msra.mxu0 0.0
    %697 = vmatprep.subr.mxu0 0.0
    %698 = vmatpush1.msra.mxu0 0.0
    %699 = vmatprep.subr.mxu0 0.0
    %700 = vmatpush1.msra.mxu0 0.0
    %701 = vmatprep.subr.mxu0 0.0
    %702 = vmatpush1.msra.mxu0 0.0
    %703 = vmatprep.subr.mxu0 0.0
    %704 = vmatpush1.msra.mxu0 0.0
    %705 = vmatprep.subr.mxu0 0.0
    %706 = vmatpush1.msra.mxu0 0.0
    %707 = vmatprep.subr.mxu0 0.0
    %708 = vmatpush1.msra.mxu0 0.0
    %709 = vmatprep.subr.mxu0 0.0
    %710 = vmatpush1.msra.mxu0 0.0
    %711 = vmatprep.subr.mxu0 0.0
    %712 = vmatpush1.msra.mxu0 0.0
    %713 = vmatprep.subr.mxu0 0.0
    %714 = vmatpush1.msra.mxu0 0.0
    %715 = vmatprep.subr.mxu0 0.0
    %716 = vmatpush1.msra.mxu0 0.0
    %717 = vmatprep.subr.mxu0 0.0
    %718 = vmatpush1.msra.mxu0 0.0
    %719 = vmatprep.subr.mxu0 0.0
    %720 = vmatpush1.msra.mxu0 0.0
    %721 = vmatprep.subr.mxu0 0.0
    %722 = vmatpush1.msra.mxu0 0.0
    %723 = vmatprep.subr.mxu0 0.0
    %724 = vmatpush1.msra.mxu0 0.0
    %725 = vmatprep.mubr.f32.mxu0 0.0
    %726 = vmatmul.mubr.f32.gmra.mrb[0].mxu0 %v655
    %v727 = vpop.f32.mrb[0].mxu0
    %v728 = vadd.f32 0.0, %v727
    %v729 = vpop.f32.mrb[0].mxu0
    %730 = vdwg.mxu0
    %v731 = vtanh.pop %v728
    %v732 = vld [vmem:[%s4] sm:$0xff]
    %v733 = vld [vmem:[%s4 + $0x8] sm:$0xff]
    %v734 = vld [vmem:[%s4 + $0x10] sm:$0xff]
    %v735 = vld [vmem:[%s4 + $0x18] sm:$0xff]
    %v736 = vld [vmem:[%s4 + $0x20] sm:$0xf]
    %v737 = vld [vmem:[%s5] sm:$0x1]
    %v739 = vlaneseq
    %v740 = vshrl.u32 %v739, 7
    %v741 = vsub.s32 0, %v740
    %v742 = vrot.slane %v737, %v741
    %vm744 = vcmask 293888
    %v746 = vsel %vm744, %v731, 0
    %vm748 = vcmask 1043456
    %v750 = vsel %vm748, %v736, 0
    %752 = vmatprep.subr.mxu0 0.0
    %753 = vmatpush1.msra.mxu0 %v732
    %754 = vmatprep.subr.mxu0 0.0
    %755 = vmatpush1.msra.mxu0 %v733
    %756 = vmatprep.subr.mxu0 0.0
    %757 = vmatpush1.msra.mxu0 %v734
    %758 = vmatprep.subr.mxu0 0.0
    %759 = vmatpush1.msra.mxu0 %v735
    %760 = vmatprep.subr.mxu0 0.0
    %761 = vmatpush1.msra.mxu0 %v750
    %762 = vmatprep.subr.mxu0 0.0
    %763 = vmatpush1.msra.mxu0 0.0
    %764 = vmatprep.subr.mxu0 0.0
    %765 = vmatpush1.msra.mxu0 0.0
    %766 = vmatprep.subr.mxu0 0.0
    %767 = vmatpush1.msra.mxu0 0.0
    %768 = vmatprep.subr.mxu0 0.0
    %769 = vmatpush1.msra.mxu0 0.0
    %770 = vmatprep.subr.mxu0 0.0
    %771 = vmatpush1.msra.mxu0 0.0
    %772 = vmatprep.subr.mxu0 0.0
    %773 = vmatpush1.msra.mxu0 0.0
    %774 = vmatprep.subr.mxu0 0.0
    %775 = vmatpush1.msra.mxu0 0.0
    %776 = vmatprep.subr.mxu0 0.0
    %777 = vmatpush1.msra.mxu0 0.0
    %778 = vmatprep.subr.mxu0 0.0
    %779 = vmatpush1.msra.mxu0 0.0
    %780 = vmatprep.subr.mxu0 0.0
    %781 = vmatpush1.msra.mxu0 0.0
    %782 = vmatprep.subr.mxu0 0.0
    %783 = vmatpush1.msra.mxu0 0.0
    %784 = vmatprep.subr.mxu0 0.0
    %785 = vmatpush1.msra.mxu0 0.0
    %786 = vmatprep.subr.mxu0 0.0
    %787 = vmatpush1.msra.mxu0 0.0
    %788 = vmatprep.subr.mxu0 0.0
    %789 = vmatpush1.msra.mxu0 0.0
    %790 = vmatprep.subr.mxu0 0.0
    %791 = vmatpush1.msra.mxu0 0.0
    %792 = vmatprep.subr.mxu0 0.0
    %793 = vmatpush1.msra.mxu0 0.0
    %794 = vmatprep.subr.mxu0 0.0
    %795 = vmatpush1.msra.mxu0 0.0
    %796 = vmatprep.subr.mxu0 0.0
    %797 = vmatpush1.msra.mxu0 0.0
    %798 = vmatprep.subr.mxu0 0.0
    %799 = vmatpush1.msra.mxu0 0.0
    %800 = vmatprep.subr.mxu0 0.0
    %801 = vmatpush1.msra.mxu0 0.0
    %802 = vmatprep.subr.mxu0 0.0
    %803 = vmatpush1.msra.mxu0 0.0
    %804 = vmatprep.subr.mxu0 0.0
    %805 = vmatpush1.msra.mxu0 0.0
    %806 = vmatprep.subr.mxu0 0.0
    %807 = vmatpush1.msra.mxu0 0.0
    %808 = vmatprep.subr.mxu0 0.0
    %809 = vmatpush1.msra.mxu0 0.0
    %810 = vmatprep.subr.mxu0 0.0
    %811 = vmatpush1.msra.mxu0 0.0
    %812 = vmatprep.subr.mxu0 0.0
    %813 = vmatpush1.msra.mxu0 0.0
    %814 = vmatprep.subr.mxu0 0.0
    %815 = vmatpush1.msra.mxu0 0.0
    %816 = vmatprep.mubr.f32.mxu0 0.0
    %817 = vmatmul.mubr.f32.gmra.mrb[0].mxu0 %v746
    %v818 = vpop.f32.mrb[0].mxu0
    %v819 = vadd.f32 %v742, %v818
    %v820 = vpop.f32.mrb[0].mxu0
    %821 = vdwg.mxu0
    %vm822 = vcmask 74752
    %v823 = vsel %vm822, %v819, -inf
    %824 = vmax.xlane.f32.xlu0 %v823
    %v825 = vpop.xlane.xlu0 %824
    %v826 = vsub.f32 %v819, %v825
    %v827 = vmul.f32 %v826, 1.442695
    %v828 = vpow.pop %v827
    %v829 = vsel %vm822, %v828, 0.0
    %830 = vadd.xlane.f32.xlu0 %v829
    %v831 = vpop.xlane.xlu0 %830
    %v832 = vlog2.pop %v831
    %v833 = vmul.f32 %v832, 0.6931472
    %v834 = vsub.f32 %v826, %v833
    %835 = vst.msk [vmem:[#allocation2] sm:$0x3] %vm822, %v834
    // Predicated region
    $region26: #{conv1d_then_linear_70.1} parent=1 // pred_check
      _
    $region27: #{conv1d_then_linear_70.1} parent=1 // pred_check_branch
      %837 = sbr.rel (0) target = $region29
    $region28: #{conv1d_then_linear_70.1} parent=1 // pred_region
      %s839 = ssub.s32 32, 32
      %840 = vsyncadd [#allocation3], %s839
      %s842 = sshll.u32 [#allocation2], 4
      %s843 = int_to_ptr.vmem [resolvable:$true] %s842
      %845 = dma.vmem_to_hbm [thread:$0]  %s843, 32, %s6, [#allocation3]
    $region29: #{conv1d_then_linear_70.1} parent=1 // pred_fallthru
      _
    // Predicated region
    $region30: #{conv1d_then_linear_70.1} parent=1 // pred_check
      _
    $region31: #{conv1d_then_linear_70.1} parent=1 // pred_check_branch
      %847 = sbr.rel (0) target = $region33
    $region32: #{conv1d_then_linear_70.1} parent=1 // pred_region
      %848 = dma.done [#allocation3], 32
    $region33: #{conv1d_then_linear_70.1} parent=1 // pred_fallthru
      _
    %849 = vsyncpa [#allocation3], 1

</llo_original>
